<compile_context>
chip_gen: v7x
topology: tpu7x:2x2x1
jax: 0.10.0
libtpu: 0.0.40
codegen_flags: <defaults>
</compile_context>

<pallas_src>
import functools

import numpy as np
import jax
import jax.numpy as jnp
from jax import lax
from jax.experimental import pallas as pl
from jax.experimental.pallas import tpu as pltpu

_LANES = 128
_MAX_TILE_ROWS = 8192                 # 8192 * 128 * 4 B = 4 MiB per f32 tile
_VMEM_LIMIT = 32 * 1024 * 1024        # explicit scoped-VMEM budget (all gens)
_E = float(np.e)


def _cdiv(a, b):
    return -(-a // b)


def _round_up(a, b):
    return _cdiv(a, b) * b


def _make_reduce_kernel(n_elems, rows, tile_rows, num_tiles):
    """Pass 1 kernel factory (closes over static shape info).

    Kernel args: (params_ref[SMEM f32[7]], x_ref, coef_ref, sum_acc, sq_acc)
    coef rows:   0=scale 1=offset 2=weight 3=bias 4=ca 5=cb 6=cd 7=unused
    """
    needs_mask = (num_tiles * tile_rows) != rows
    inv_n = np.float32(1.0 / n_elems)
    # torch .std() is unbiased (N-1); guard N==1 (degenerate, matches-ish).
    inv_nm1 = np.float32(1.0 / (n_elems - 1)) if n_elems > 1 else np.float32(1.0)

    def kernel(params_ref, x_ref, coef_ref, sum_acc, sq_acc):
        i = pl.program_id(0)

        @pl.when(i == 0)
        def _():
            sum_acc[...] = jnp.zeros_like(sum_acc)
            sq_acc[...] = jnp.zeros_like(sq_acc)

        x = x_ref[...]
        if needs_mask:
            # Only the ragged last tile reads rows past the array end (the DMA
            # is clamped; the OOB region is garbage) -> zero it before summing.
            row = lax.broadcasted_iota(jnp.int32, x.shape, 0) + i * tile_rows
            x = jnp.where(row < rows, x, 0.0)

        # Pass 1 is HBM-bound; a single cross-sublane reduce per tile is noise.
        sum_acc[...] += jnp.sum(x, axis=0, keepdims=True)
        sq_acc[...] += jnp.sum(x * x, axis=0, keepdims=True)

        @pl.when(i == num_tiles - 1)
        def _():
            # Finalize entirely with small vector ops (EUP/VALU), then emit a
            # lane-broadcast coefficient block for pass 2.
            ones = jnp.ones((1, _LANES), jnp.float32)
            total = jnp.sum(sum_acc[...], axis=1, keepdims=True)     # (1,1)
            total_sq = jnp.sum(sq_acc[...], axis=1, keepdims=True)   # (1,1)
            mean = total * inv_n
            var = (total_sq - total * mean) * inv_nm1
            rstd = lax.rsqrt(var)                                    # EUP

            mean_b = mean * ones                                     # (1,128)
            rstd_b = rstd * ones
            iscale_b = params_ref[0] * ones
            w_b = params_ref[1] * ones
            b_b = params_ref[2] * ones
            a_b = params_ref[3] * ones
            bb_b = params_ref[4] * ones
            c_b = params_ref[5] * ones
            d_b = params_ref[6] * ones

            scale_b = iscale_b * rstd_b
            coef_ref[0:1, :] = scale_b
            coef_ref[1:2, :] = mean_b * scale_b                      # offset
            coef_ref[2:3, :] = w_b
            coef_ref[3:4, :] = b_b
            coef_ref[4:5, :] = a_b + bb_b                            # ca
            coef_ref[5:6, :] = c_b + d_b                             # cb
            coef_ref[6:7, :] = np.float32(_E) * (a_b - bb_b + c_b - d_b)  # cd
            coef_ref[7:8, :] = jnp.zeros((1, _LANES), jnp.float32)

    return kernel


def _aeg_kernel(coef_ref, x_ref, o_ref):
    """Pass 2: elementwise AEG transform with folded coefficients.

    coef_ref is an (8,128) lane-broadcast coefficient block from pass 1;
    each (1,128) row broadcasts over the tile's sublanes for free.
    """
    scale = coef_ref[0:1, :]
    offset = coef_ref[1:2, :]
    weight = coef_ref[2:3, :]
    bias = coef_ref[3:4, :]
    ca = coef_ref[4:5, :]
    cb = coef_ref[5:6, :]
    cd = coef_ref[6:7, :]

    x = x_ref[...]
    data = x * scale - offset                 # normalized * iscale

    t1 = jnp.tanh(weight * data + bias)       # EUP
    dy = np.float32(_E) * jnp.tanh(data)      # EUP
    epos = jnp.exp(dy)                        # EUP
    eneg = jnp.exp(-dy)                       # EUP (exact; avoids divide seq)

    o_ref[...] = (data * (ca * epos + cb * eneg) + cd * t1).astype(o_ref.dtype)


@functools.partial(jax.jit, static_argnames=("max_tile_rows",))
def optaeg_v1(x, params, *, max_tile_rows=_MAX_TILE_ROWS):
    """OptAEGV1 forward.  x: any-shape float tensor (NCHW in the module);
    params: f32[7] = [iscale, weight, bias, a, b, c, d]."""
    shape = x.shape
    n = int(np.prod(shape))
    params = params.reshape(-1).astype(jnp.float32)

    lane_aligned = (n % _LANES == 0)
    rows = _cdiv(n, _LANES)

    # Balanced tile size: multiple of 8 sublanes, <= max_tile_rows, minimal
    # overhang on the ragged last tile (overhang costs no HBM traffic, only a
    # few masked rows of compute).
    num_tiles = _cdiv(rows, max_tile_rows)
    tile_rows = min(max(8, _round_up(_cdiv(rows, num_tiles), 8)),
                    _round_up(rows, 8))
    num_tiles = _cdiv(rows, tile_rows)

    flat = x.reshape(-1).astype(jnp.float32)
    if lane_aligned:
        slab = flat.reshape(rows, _LANES)     # pure bitcast: no copy
    else:
        # TODO(synk): the sub-128 remainder forces one pad copy + one output
        # slice copy; a fully copy-free ragged path would need manual DMA.
        flat = jnp.pad(flat, (0, rows * _LANES - n))   # zeros: inert in sums
        slab = flat.reshape(rows, _LANES)

    # ---- pass 1: tiled sum / sum-of-squares + in-kernel finalize ---------
    coef = pl.pallas_call(
        _make_reduce_kernel(n, rows, tile_rows, num_tiles),
        out_shape=jax.ShapeDtypeStruct((8, _LANES), jnp.float32),
        grid_spec=pltpu.PrefetchScalarGridSpec(
            num_scalar_prefetch=0,
            grid=(num_tiles,),
            in_specs=[
                pl.BlockSpec(memory_space=pltpu.MemorySpace.SMEM),     # params
                pl.BlockSpec((tile_rows, _LANES), lambda i: (i, 0)),   # data
            ],
            out_specs=pl.BlockSpec((8, _LANES), lambda i: (0, 0)),     # coef
            scratch_shapes=[pltpu.VMEM((1, _LANES), jnp.float32),
                            pltpu.VMEM((1, _LANES), jnp.float32)],
        ),
        compiler_params=pltpu.CompilerParams(
            dimension_semantics=("arbitrary",),
            vmem_limit_bytes=_VMEM_LIMIT),
        cost_estimate=pl.CostEstimate(flops=3 * n, transcendentals=0,
                                      bytes_accessed=4 * n),
    )(params, slab)

    # ---- pass 2: tiled elementwise AEG transform --------------------------
    out_slab = pl.pallas_call(
        _aeg_kernel,
        out_shape=jax.ShapeDtypeStruct((rows, _LANES), jnp.float32),
        grid_spec=pltpu.PrefetchScalarGridSpec(
            num_scalar_prefetch=0,
            grid=(num_tiles,),
            in_specs=[
                pl.BlockSpec((8, _LANES), lambda i: (0, 0)),           # coef
                pl.BlockSpec((tile_rows, _LANES), lambda i: (i, 0)),   # data
            ],
            out_specs=pl.BlockSpec((tile_rows, _LANES), lambda i: (i, 0)),
        ),
        compiler_params=pltpu.CompilerParams(
            dimension_semantics=("parallel",),
            vmem_limit_bytes=_VMEM_LIMIT),
        cost_estimate=pl.CostEstimate(flops=12 * n, transcendentals=4 * n,
                                      bytes_accessed=8 * n),
    )(coef, slab)

    if lane_aligned:
        out = out_slab.reshape(shape)          # pure bitcast: no copy
    else:
        out = out_slab.reshape(-1)[:n].reshape(shape)
    return out.astype(x.dtype)


def optaeg_v1_ref(x, params):
    """Pure-JAX reference (mirrors the PyTorch forward)."""
    iscale, weight, bias, a, b, c, d = (params[i] for i in range(7))
    shape = x.shape
    mean = jnp.mean(x)
    std = jnp.std(x, ddof=1)                   # torch .std() is unbiased
    data = (x - mean) / std * iscale
    data = data.reshape(-1)
    dx = np.e * jnp.tanh(weight * data + bias)
    dy = np.e * jnp.tanh(data)
    data1 = data * jnp.exp(dy) + dx
    data2 = data * jnp.exp(dy) - dx
    data3 = data * jnp.exp(-dy) + dx
    data4 = data * jnp.exp(-dy) - dx
    out = a * data1 + b * data2 + c * data3 + d * data4
    return out.reshape(shape)


if __name__ == "__main__":
    key = jax.random.PRNGKey(0)
    k_x, k_p = jax.random.split(key)

    # 7 scalar params (iscale, weight, bias, a, b, c, d); each is a (1,1,1,1)
    # i.e. scalar parameter in the PyTorch module, drawn from N(0, 1).
    params = jax.random.normal(k_p, (7,), dtype=jnp.float32)

    # Small NCHW input consistent with the module's 4-D parameter broadcasting.
    x = jax.random.normal(k_x, (2, 4, 16, 16), dtype=jnp.float32)

    out = jax.block_until_ready(optaeg_v1(x, params))

    ref = optaeg_v1_ref(x, params)
    np.testing.assert_allclose(np.asarray(out), np.asarray(ref),
                               rtol=2e-4, atol=5e-4)
    print("KERNEL_OK")
</pallas_src>

<mosaic_0001>
module attributes {stable_mosaic.version = 11 : i64} {
  func.func @kernel(%arg0: i32, %arg1: memref<7xf32, #tpu.memory_space<smem>>, %arg2: memref<16x128xf32, #tpu.memory_space<vmem>>, %arg3: memref<8x128xf32, #tpu.memory_space<vmem>>, %arg4: memref<1x128xf32, #tpu.memory_space<vmem>>, %arg5: memref<1x128xf32, #tpu.memory_space<vmem>>) attributes {dimension_semantics = [#tpu.dimension_semantics<arbitrary>], iteration_bounds = array<i64: 1>, scalar_prefetch = 0 : i64, scratch_operands = 2 : i64, tpu.core_type = #tpu.core_type<tc>, window_params = [{transform_indices = @transform_0, window_bounds = array<i64: 7>}, {transform_indices = @transform_1, window_bounds = array<i64: 16, 128>}, {pipeline_mode = #tpu.pipeline_mode<synchronous>, transform_indices = @transform_2, window_bounds = array<i64: 8, 128>}]} {
    %c0_i32 = arith.constant 0 : i32
    %0 = arith.cmpi eq, %arg0, %c0_i32 : i32
    %1 = arith.extui %0 : i1 to i32
    %c0_i32_0 = arith.constant 0 : i32
    %2 = arith.cmpi ne, %1, %c0_i32_0 : i32
    scf.if %2 {
      %cst_13 = arith.constant 0.000000e+00 : f32
      %18 = vector.broadcast %cst_13 : f32 to vector<1x128xf32>
      %c0_14 = arith.constant 0 : index
      %c0_15 = arith.constant 0 : index
      %19 = vector.load %arg4[%c0_14, %c0_15] : memref<1x128xf32, #tpu.memory_space<vmem>>, vector<1x128xf32>
      tpu.vector_store %arg4[%c0_14, %c0_15], %18 {strides = array<i32>} : memref<1x128xf32, #tpu.memory_space<vmem>>, vector<1x128xf32>,
      %cst_16 = arith.constant 0.000000e+00 : f32
      %20 = vector.broadcast %cst_16 : f32 to vector<1x128xf32>
      %c0_17 = arith.constant 0 : index
      %c0_18 = arith.constant 0 : index
      %21 = vector.load %arg5[%c0_17, %c0_18] : memref<1x128xf32, #tpu.memory_space<vmem>>, vector<1x128xf32>
      tpu.vector_store %arg5[%c0_17, %c0_18], %20 {strides = array<i32>} : memref<1x128xf32, #tpu.memory_space<vmem>>, vector<1x128xf32>,
    } else {
    }
    %c0 = arith.constant 0 : index
    %c0_1 = arith.constant 0 : index
    %3 = vector.load %arg2[%c0, %c0_1] : memref<16x128xf32, #tpu.memory_space<vmem>>, vector<16x128xf32>
    %c0_2 = arith.constant 0 : index
    %c0_3 = arith.constant 0 : index
    %4 = vector.load %arg4[%c0_2, %c0_3] : memref<1x128xf32, #tpu.memory_space<vmem>>, vector<1x128xf32>
    %cst = arith.constant dense<0.000000e+00> : vector<128xf32>
    %5 = vector.multi_reduction <add>, %3, %cst [0] : vector<16x128xf32> to vector<128xf32>
    %6 = vector.shape_cast %5 : vector<128xf32> to vector<1x128xf32>
    %7 = arith.addf %4, %6 : vector<1x128xf32>
    %c0_4 = arith.constant 0 : index
    %c0_5 = arith.constant 0 : index
    %8 = vector.load %arg4[%c0_4, %c0_5] : memref<1x128xf32, #tpu.memory_space<vmem>>, vector<1x128xf32>
    tpu.vector_store %arg4[%c0_4, %c0_5], %7 {strides = array<i32>} : memref<1x128xf32, #tpu.memory_space<vmem>>, vector<1x128xf32>,
    %c0_6 = arith.constant 0 : index
    %c0_7 = arith.constant 0 : index
    %9 = vector.load %arg5[%c0_6, %c0_7] : memref<1x128xf32, #tpu.memory_space<vmem>>, vector<1x128xf32>
    %10 = arith.mulf %3, %3 : vector<16x128xf32>
    %cst_8 = arith.constant dense<0.000000e+00> : vector<128xf32>
    %11 = vector.multi_reduction <add>, %10, %cst_8 [0] : vector<16x128xf32> to vector<128xf32>
    %12 = vector.shape_cast %11 : vector<128xf32> to vector<1x128xf32>
    %13 = arith.addf %9, %12 : vector<1x128xf32>
    %c0_9 = arith.constant 0 : index
    %c0_10 = arith.constant 0 : index
    %14 = vector.load %arg5[%c0_9, %c0_10] : memref<1x128xf32, #tpu.memory_space<vmem>>, vector<1x128xf32>
    tpu.vector_store %arg5[%c0_9, %c0_10], %13 {strides = array<i32>} : memref<1x128xf32, #tpu.memory_space<vmem>>, vector<1x128xf32>,
    %c0_i32_11 = arith.constant 0 : i32
    %15 = arith.cmpi eq, %arg0, %c0_i32_11 : i32
    %16 = arith.extui %15 : i1 to i32
    %c0_i32_12 = arith.constant 0 : i32
    %17 = arith.cmpi ne, %16, %c0_i32_12 : i32
    scf.if %17 {
      %cst_13 = arith.constant 1.000000e+00 : f32
      %18 = vector.broadcast %cst_13 : f32 to vector<1x128xf32>
      %c0_14 = arith.constant 0 : index
      %c0_15 = arith.constant 0 : index
      %19 = vector.load %arg4[%c0_14, %c0_15] : memref<1x128xf32, #tpu.memory_space<vmem>>, vector<1x128xf32>
      %cst_16 = arith.constant dense<0.000000e+00> : vector<1xf32>
      %20 = vector.multi_reduction <add>, %19, %cst_16 [1] : vector<1x128xf32> to vector<1xf32>
      %21 = vector.shape_cast %20 : vector<1xf32> to vector<1x1xf32>
      %c0_17 = arith.constant 0 : index
      %c0_18 = arith.constant 0 : index
      %22 = vector.load %arg5[%c0_17, %c0_18] : memref<1x128xf32, #tpu.memory_space<vmem>>, vector<1x128xf32>
      %cst_19 = arith.constant dense<0.000000e+00> : vector<1xf32>
      %23 = vector.multi_reduction <add>, %22, %cst_19 [1] : vector<1x128xf32> to vector<1xf32>
      %24 = vector.shape_cast %23 : vector<1xf32> to vector<1x1xf32>
      %cst_20 = arith.constant 4.8828125E-4 : f32
      %25 = vector.broadcast %cst_20 : f32 to vector<1x1xf32>
      %26 = arith.mulf %21, %25 : vector<1x1xf32>
      %27 = arith.mulf %21, %26 : vector<1x1xf32>
      %28 = arith.subf %24, %27 : vector<1x1xf32>
      %cst_21 = arith.constant 4.88519785E-4 : f32
      %29 = vector.broadcast %cst_21 : f32 to vector<1x1xf32>
      %30 = arith.mulf %28, %29 : vector<1x1xf32>
      %31 = math.rsqrt %30 : vector<1x1xf32>
      %32 = vector.broadcast %26 : vector<1x1xf32> to vector<1x128xf32>
      %33 = arith.mulf %32, %18 : vector<1x128xf32>
      %34 = vector.broadcast %31 : vector<1x1xf32> to vector<1x128xf32>
      %35 = arith.mulf %34, %18 : vector<1x128xf32>
      %c0_22 = arith.constant 0 : index
      %36 = memref.load %arg1[%c0_22] : memref<7xf32, #tpu.memory_space<smem>>
      %37 = vector.broadcast %36 : f32 to vector<1x128xf32>
      %38 = arith.mulf %37, %18 : vector<1x128xf32>
      %c1 = arith.constant 1 : index
      %39 = memref.load %arg1[%c1] : memref<7xf32, #tpu.memory_space<smem>>
      %40 = vector.broadcast %39 : f32 to vector<1x128xf32>
      %41 = arith.mulf %40, %18 : vector<1x128xf32>
      %c2 = arith.constant 2 : index
      %42 = memref.load %arg1[%c2] : memref<7xf32, #tpu.memory_space<smem>>
      %43 = vector.broadcast %42 : f32 to vector<1x128xf32>
      %44 = arith.mulf %43, %18 : vector<1x128xf32>
      %c3 = arith.constant 3 : index
      %45 = memref.load %arg1[%c3] : memref<7xf32, #tpu.memory_space<smem>>
      %46 = vector.broadcast %45 : f32 to vector<1x128xf32>
      %47 = arith.mulf %46, %18 : vector<1x128xf32>
      %c4 = arith.constant 4 : index
      %48 = memref.load %arg1[%c4] : memref<7xf32, #tpu.memory_space<smem>>
      %49 = vector.broadcast %48 : f32 to vector<1x128xf32>
      %50 = arith.mulf %49, %18 : vector<1x128xf32>
      %c5 = arith.constant 5 : index
      %51 = memref.load %arg1[%c5] : memref<7xf32, #tpu.memory_space<smem>>
      %52 = vector.broadcast %51 : f32 to vector<1x128xf32>
      %53 = arith.mulf %52, %18 : vector<1x128xf32>
      %c6 = arith.constant 6 : index
      %54 = memref.load %arg1[%c6] : memref<7xf32, #tpu.memory_space<smem>>
      %55 = vector.broadcast %54 : f32 to vector<1x128xf32>
      %56 = arith.mulf %55, %18 : vector<1x128xf32>
      %57 = arith.mulf %38, %35 : vector<1x128xf32>
      %c0_23 = arith.constant 0 : index
      %c0_24 = arith.constant 0 : index
      %58 = vector.load %arg3[%c0_23, %c0_24] : memref<8x128xf32, #tpu.memory_space<vmem>>, vector<1x128xf32>
      tpu.vector_store %arg3[%c0_23, %c0_24], %57 {strides = array<i32>} : memref<8x128xf32, #tpu.memory_space<vmem>>, vector<1x128xf32>,
      %59 = arith.mulf %33, %57 : vector<1x128xf32>
      %c1_25 = arith.constant 1 : index
      %c0_26 = arith.constant 0 : index
      %60 = vector.load %arg3[%c1_25, %c0_26] : memref<8x128xf32, #tpu.memory_space<vmem>>, vector<1x128xf32>
      tpu.vector_store %arg3[%c1_25, %c0_26], %59 {strides = array<i32>} : memref<8x128xf32, #tpu.memory_space<vmem>>, vector<1x128xf32>,
      %c2_27 = arith.constant 2 : index
      %c0_28 = arith.constant 0 : index
      %61 = vector.load %arg3[%c2_27, %c0_28] : memref<8x128xf32, #tpu.memory_space<vmem>>, vector<1x128xf32>
      tpu.vector_store %arg3[%c2_27, %c0_28], %41 {strides = array<i32>} : memref<8x128xf32, #tpu.memory_space<vmem>>, vector<1x128xf32>,
      %c3_29 = arith.constant 3 : index
      %c0_30 = arith.constant 0 : index
      %62 = vector.load %arg3[%c3_29, %c0_30] : memref<8x128xf32, #tpu.memory_space<vmem>>, vector<1x128xf32>
      tpu.vector_store %arg3[%c3_29, %c0_30], %44 {strides = array<i32>} : memref<8x128xf32, #tpu.memory_space<vmem>>, vector<1x128xf32>,
      %63 = arith.addf %47, %50 : vector<1x128xf32>
      %c4_31 = arith.constant 4 : index
      %c0_32 = arith.constant 0 : index
      %64 = vector.load %arg3[%c4_31, %c0_32] : memref<8x128xf32, #tpu.memory_space<vmem>>, vector<1x128xf32>
      tpu.vector_store %arg3[%c4_31, %c0_32], %63 {strides = array<i32>} : memref<8x128xf32, #tpu.memory_space<vmem>>, vector<1x128xf32>,
      %65 = arith.addf %53, %56 : vector<1x128xf32>
      %c5_33 = arith.constant 5 : index
      %c0_34 = arith.constant 0 : index
      %66 = vector.load %arg3[%c5_33, %c0_34] : memref<8x128xf32, #tpu.memory_space<vmem>>, vector<1x128xf32>
      tpu.vector_store %arg3[%c5_33, %c0_34], %65 {strides = array<i32>} : memref<8x128xf32, #tpu.memory_space<vmem>>, vector<1x128xf32>,
      %67 = arith.subf %47, %50 : vector<1x128xf32>
      %68 = arith.addf %67, %53 : vector<1x128xf32>
      %69 = arith.subf %68, %56 : vector<1x128xf32>
      %cst_35 = arith.constant 2.71828175 : f32
      %70 = vector.broadcast %cst_35 : f32 to vector<1x128xf32>
      %71 = arith.mulf %70, %69 : vector<1x128xf32>
      %c6_36 = arith.constant 6 : index
      %c0_37 = arith.constant 0 : index
      %72 = vector.load %arg3[%c6_36, %c0_37] : memref<8x128xf32, #tpu.memory_space<vmem>>, vector<1x128xf32>
      tpu.vector_store %arg3[%c6_36, %c0_37], %71 {strides = array<i32>} : memref<8x128xf32, #tpu.memory_space<vmem>>, vector<1x128xf32>,
      %cst_38 = arith.constant 0.000000e+00 : f32
      %73 = vector.broadcast %cst_38 : f32 to vector<1x128xf32>
      %c7 = arith.constant 7 : index
      %c0_39 = arith.constant 0 : index
      %74 = vector.load %arg3[%c7, %c0_39] : memref<8x128xf32, #tpu.memory_space<vmem>>, vector<1x128xf32>
      tpu.vector_store %arg3[%c7, %c0_39], %73 {strides = array<i32>} : memref<8x128xf32, #tpu.memory_space<vmem>>, vector<1x128xf32>,
    } else {
    }
    return
  }
  func.func @transform_0(%arg0: i32) -> i32 {
    %c0_i32 = arith.constant 0 : i32
    %c0_i32_0 = arith.constant 0 : i32
    return %c0_i32 : i32
  }
  func.func @transform_1(%arg0: i32) -> (i32, i32) {
    %c0_i32 = arith.constant 0 : i32
    %c0_i32_0 = arith.constant 0 : i32
    return %arg0, %c0_i32 : i32, i32
  }
  func.func @transform_2(%arg0: i32) -> (i32, i32) {
    %c0_i32 = arith.constant 0 : i32
    %c0_i32_0 = arith.constant 0 : i32
    %c0_i32_1 = arith.constant 0 : i32
    return %c0_i32, %c0_i32_0 : i32, i32
  }
}

module attributes {stable_mosaic.version = 11 : i64} {
  func.func @_aeg_kernel(%arg0: i32, %arg1: memref<8x128xf32, #tpu.memory_space<vmem>>, %arg2: memref<16x128xf32, #tpu.memory_space<vmem>>, %arg3: memref<16x128xf32, #tpu.memory_space<vmem>>) attributes {dimension_semantics = [#tpu.dimension_semantics<parallel>], iteration_bounds = array<i64: 1>, scalar_prefetch = 0 : i64, scratch_operands = 0 : i64, tpu.core_type = #tpu.core_type<tc>, window_params = [{pipeline_mode = #tpu.pipeline_mode<synchronous>, transform_indices = @transform_0, window_bounds = array<i64: 8, 128>}, {transform_indices = @transform_1, window_bounds = array<i64: 16, 128>}, {transform_indices = @transform_2, window_bounds = array<i64: 16, 128>}]} {
    %c0 = arith.constant 0 : index
    %c0_0 = arith.constant 0 : index
    %0 = vector.load %arg1[%c0, %c0_0] : memref<8x128xf32, #tpu.memory_space<vmem>>, vector<1x128xf32>
    %c1 = arith.constant 1 : index
    %c0_1 = arith.constant 0 : index
    %1 = vector.load %arg1[%c1, %c0_1] : memref<8x128xf32, #tpu.memory_space<vmem>>, vector<1x128xf32>
    %c2 = arith.constant 2 : index
    %c0_2 = arith.constant 0 : index
    %2 = vector.load %arg1[%c2, %c0_2] : memref<8x128xf32, #tpu.memory_space<vmem>>, vector<1x128xf32>
    %c3 = arith.constant 3 : index
    %c0_3 = arith.constant 0 : index
    %3 = vector.load %arg1[%c3, %c0_3] : memref<8x128xf32, #tpu.memory_space<vmem>>, vector<1x128xf32>
    %c4 = arith.constant 4 : index
    %c0_4 = arith.constant 0 : index
    %4 = vector.load %arg1[%c4, %c0_4] : memref<8x128xf32, #tpu.memory_space<vmem>>, vector<1x128xf32>
    %c5 = arith.constant 5 : index
    %c0_5 = arith.constant 0 : index
    %5 = vector.load %arg1[%c5, %c0_5] : memref<8x128xf32, #tpu.memory_space<vmem>>, vector<1x128xf32>
    %c6 = arith.constant 6 : index
    %c0_6 = arith.constant 0 : index
    %6 = vector.load %arg1[%c6, %c0_6] : memref<8x128xf32, #tpu.memory_space<vmem>>, vector<1x128xf32>
    %c0_7 = arith.constant 0 : index
    %c0_8 = arith.constant 0 : index
    %7 = vector.load %arg2[%c0_7, %c0_8] : memref<16x128xf32, #tpu.memory_space<vmem>>, vector<16x128xf32>
    %8 = vector.broadcast %0 : vector<1x128xf32> to vector<16x128xf32>
    %9 = arith.mulf %7, %8 : vector<16x128xf32>
    %10 = vector.broadcast %1 : vector<1x128xf32> to vector<16x128xf32>
    %11 = arith.subf %9, %10 : vector<16x128xf32>
    %12 = vector.broadcast %2 : vector<1x128xf32> to vector<16x128xf32>
    %13 = arith.mulf %12, %11 : vector<16x128xf32>
    %14 = vector.broadcast %3 : vector<1x128xf32> to vector<16x128xf32>
    %15 = arith.addf %13, %14 : vector<16x128xf32>
    %16 = math.tanh %15 : vector<16x128xf32>
    %17 = math.tanh %11 : vector<16x128xf32>
    %cst = arith.constant 2.71828175 : f32
    %18 = vector.broadcast %cst : f32 to vector<16x128xf32>
    %19 = arith.mulf %18, %17 : vector<16x128xf32>
    %20 = math.exp %19 : vector<16x128xf32>
    %cst_9 = arith.constant 0.000000e+00 : f32
    %21 = vector.broadcast %cst_9 : f32 to vector<16x128xf32>
    %22 = arith.subf %21, %19 : vector<16x128xf32>
    %23 = math.exp %22 : vector<16x128xf32>
    %24 = vector.broadcast %4 : vector<1x128xf32> to vector<16x128xf32>
    %25 = arith.mulf %24, %20 : vector<16x128xf32>
    %26 = vector.broadcast %5 : vector<1x128xf32> to vector<16x128xf32>
    %27 = arith.mulf %26, %23 : vector<16x128xf32>
    %28 = arith.addf %25, %27 : vector<16x128xf32>
    %29 = arith.mulf %11, %28 : vector<16x128xf32>
    %30 = vector.broadcast %6 : vector<1x128xf32> to vector<16x128xf32>
    %31 = arith.mulf %30, %16 : vector<16x128xf32>
    %32 = arith.addf %29, %31 : vector<16x128xf32>
    %c0_10 = arith.constant 0 : index
    %c0_11 = arith.constant 0 : index
    %33 = vector.load %arg3[%c0_10, %c0_11] : memref<16x128xf32, #tpu.memory_space<vmem>>, vector<16x128xf32>
    tpu.vector_store %arg3[%c0_10, %c0_11], %32 {strides = array<i32>} : memref<16x128xf32, #tpu.memory_space<vmem>>, vector<16x128xf32>,
    return
  }
  func.func @transform_0(%arg0: i32) -> (i32, i32) {
    %c0_i32 = arith.constant 0 : i32
    %c0_i32_0 = arith.constant 0 : i32
    %c0_i32_1 = arith.constant 0 : i32
    return %c0_i32, %c0_i32_0 : i32, i32
  }
  func.func @transform_1(%arg0: i32) -> (i32, i32) {
    %c0_i32 = arith.constant 0 : i32
    %c0_i32_0 = arith.constant 0 : i32
    return %arg0, %c0_i32 : i32, i32
  }
  func.func @transform_2(%arg0: i32) -> (i32, i32) {
    %c0_i32 = arith.constant 0 : i32
    %c0_i32_0 = arith.constant 0 : i32
    return %arg0, %c0_i32 : i32, i32
  }
}

</mosaic_0001>

<llo_original>
// kernel: optaeg_v1.2
$region0: #{optaeg_v1.2}
  #allocation0 [shape = 'u32[]', space=smem, size = 0x4, offset = 0x4, fixed_abs, tag = 'smem constant byte address 0x4 - core index']
  #allocation1 [shape = 'u32[144,128]{1,0:T(1,128)}', space=vmem, size = 0x12000, scoped, tag = 'internal scratch']
  #allocation2 [shape = 'f32[1,128]{1,0:T(1,128)}', space=vmem, size = 0x200, scoped, tag = 'scratch operand']
  #allocation3 [shape = 'f32[1,128]{1,0:T(1,128)}', space=vmem, size = 0x200, scoped, tag = 'scratch operand']
  %s0 = inlined_call_operand.vmem [shape: f32[7], index: 0, kind: input, shape index: {}]
  %s1 = inlined_call_operand.vmem [shape: f32[16,128], index: 1, kind: input, shape index: {}]
  %s2 = inlined_call_operand.vmem [shape: f32[8,128], index: 2, kind: output, shape index: {}]
  %s3 = sld [smem:[#allocation0]]
  $region30: #{optaeg_v1.2} parent=0
    _
  %s5 = ssub.s32 1, %s3
  %s6 = scalar_select 0, %s5, %s3
  $region1: #{optaeg_v1.2} parent=0
    #allocation4 [shape = 'u8[512]{0}', space=smem, size = 0x200, scoped, tag = 'input window, operand 0, single buffered']
    #allocation5 [shape = 's32[1]{0}', space=sflag, size = 0x4, scoped, tag = 'scoped memory for optaeg_v1.2']
    %7 = vsyncpa [#allocation5], 0
    // Predicated region
    $region2: #{optaeg_v1.2} parent=1 // pred_check
      _
    $region3: #{optaeg_v1.2} parent=1 // pred_check_branch
      %9 = sbr.rel (0) target = $region5
    $region4: #{optaeg_v1.2} parent=1 // pred_region
      %s11 = ssub.s32 16, 16
      %12 = vsyncadd [#allocation5], %s11
      %s14 = sshll.u32 %s0, 4
      %s15 = int_to_ptr.vmem [resolvable:$true] %s14
      %17 = dma.vmem_to_smem %s15, 16, [#allocation4], [#allocation5]
    $region5: #{optaeg_v1.2} parent=1 // pred_fallthru
      _
    // Predicated region
    $region6: #{optaeg_v1.2} parent=1 // pred_check
      _
    $region7: #{optaeg_v1.2} parent=1 // pred_check_branch
      %19 = sbr.rel (0) target = $region9
    $region8: #{optaeg_v1.2} parent=1 // pred_region
      _
    $region9: #{optaeg_v1.2} parent=1 // pred_fallthru
      _
    // Predicated region
    $region10: #{optaeg_v1.2} parent=1 // pred_check
      _
    $region11: #{optaeg_v1.2} parent=1 // pred_check_branch
      %21 = sbr.rel (0) target = $region13
    $region12: #{optaeg_v1.2} parent=1 // pred_region
      %22 = dma.done [#allocation5], 16
    $region13: #{optaeg_v1.2} parent=1 // pred_fallthru
      _
    %23 = sfence
    %p24 = scmp.eq.s32.totalorder 0, 0
    // Predicated region
    $region14: #{optaeg_v1.2} parent=1 // pred_check
      %p25 = pneg %p24
    $region15: #{optaeg_v1.2} parent=1 // pred_check_branch
      %27 = sbr.rel (%p25) target = $region17
    $region16: #{optaeg_v1.2} parent=1 // pred_region
      %28 = vst [vmem:[#allocation2] sm:$0x1] 0.0
      %29 = vst [vmem:[#allocation3] sm:$0x1] 0.0
    $region17: #{optaeg_v1.2} parent=1 // pred_fallthru
      _
    %v30 = vld [vmem:[%s1] sm:$0xff]
    %v31 = vld [vmem:[%s1 + $0x8] sm:$0xff]
    %v32 = vld [vmem:[#allocation2] sm:$0x1]
    %v33 = vadd.f32 %v30, %v31
    %v34 = vrot.slane %v33, 4
    %v35 = vadd.f32 %v33, %v34
    %v36 = vrot.slane %v35, 2
    %v37 = vadd.f32 %v35, %v36
    %v38 = vrot.slane %v37, 1
    %v39 = vadd.f32 %v37, %v38
    %v40 = vadd.f32 %v32, %v39
    %41 = vst [vmem:[#allocation2] sm:$0x1] %v40
    %v42 = vld [vmem:[#allocation3] sm:$0x1]
    %v43 = vmul.f32 %v30, %v30
    %v44 = vmul.f32 %v31, %v31
    %v45 = vadd.f32 %v43, %v44
    %v46 = vrot.slane %v45, 4
    %v47 = vadd.f32 %v45, %v46
    %v48 = vrot.slane %v47, 2
    %v49 = vadd.f32 %v47, %v48
    %v50 = vrot.slane %v49, 1
    %v51 = vadd.f32 %v49, %v50
    %v52 = vadd.f32 %v42, %v51
    %53 = vst [vmem:[#allocation3] sm:$0x1] %v52
    // Predicated region
    $region18: #{optaeg_v1.2} parent=1 // pred_check
      %p54 = pneg %p24
    $region19: #{optaeg_v1.2} parent=1 // pred_check_branch
      %56 = sbr.rel (%p54) target = $region21
    $region20: #{optaeg_v1.2} parent=1 // pred_region
      %v57 = vld [vmem:[#allocation2] sm:$0x1]
      %vm58 = vcmask 1040384
      %v59 = vsel %vm58, %v57, 0.0
      %60 = vadd.xlane.f32.xlu0 %v59
      %v61 = vpop.xlane.xlu0 %60
      %v62 = vld [vmem:[#allocation3] sm:$0x1]
      %v63 = vsel %vm58, %v62, 0.0
      %64 = vadd.xlane.f32.xlu0 %v63
      %v65 = vpop.xlane.xlu0 %64
      %v66 = vmul.f32 %v61, 0.00048828125
      %v67 = vmul.f32 %v61, %v66
      %v68 = vsub.f32 %v65, %v67
      %v69 = vmul.f32 %v68, 0.0004885198
      %v70 = vrsqrt.pop %v69
      %s71 = sld [smem:[#allocation4]]
      %v72 = vstv %s71
      %s73 = sld [smem:[#allocation4 + $0x1]]
      %v74 = vstv %s73
      %s75 = sld [smem:[#allocation4 + $0x2]]
      %v76 = vstv %s75
      %s77 = sld [smem:[#allocation4 + $0x3]]
      %v78 = vstv %s77
      %s79 = sld [smem:[#allocation4 + $0x4]]
      %v80 = vstv %s79
      %s81 = sld [smem:[#allocation4 + $0x5]]
      %v82 = vstv %s81
      %s83 = sld [smem:[#allocation4 + $0x6]]
      %v84 = vstv %s83
      %v85 = vmul.f32 %v72, %v70
      %86 = vst [vmem:[%s2] sm:$0x1] %v85
      %v87 = vmul.f32 %v66, %v85
      %88 = vst [vmem:[%s2 + $0x1] sm:$0x1] %v87
      %89 = vst [vmem:[%s2 + $0x2] sm:$0x1] %v74
      %90 = vst [vmem:[%s2 + $0x3] sm:$0x1] %v76
      %v91 = vadd.f32 %v78, %v80
      %92 = vst [vmem:[%s2 + $0x4] sm:$0x1] %v91
      %v93 = vadd.f32 %v82, %v84
      %94 = vst [vmem:[%s2 + $0x5] sm:$0x1] %v93
      %v95 = vsub.f32 %v78, %v80
      %v96 = vadd.f32 %v95, %v82
      %v97 = vsub.f32 %v96, %v84
      %v98 = vmul.f32 %v97, 2.7182817
      %99 = vst [vmem:[%s2 + $0x6] sm:$0x1] %v98
      %100 = vst [vmem:[%s2 + $0x7] sm:$0x1] 0.0
    $region21: #{optaeg_v1.2} parent=1 // pred_fallthru
      _
    // Predicated region
    $region22: #{optaeg_v1.2} parent=1 // pred_check
      _
    $region23: #{optaeg_v1.2} parent=1 // pred_check_branch
      %102 = sbr.rel (0) target = $region25
    $region24: #{optaeg_v1.2} parent=1 // pred_region
      _
    $region25: #{optaeg_v1.2} parent=1 // pred_fallthru
      _
    // Predicated region
    $region26: #{optaeg_v1.2} parent=1 // pred_check
      _
    $region27: #{optaeg_v1.2} parent=1 // pred_check_branch
      %104 = sbr.rel (0) target = $region29
    $region28: #{optaeg_v1.2} parent=1 // pred_region
      _
    $region29: #{optaeg_v1.2} parent=1 // pred_fallthru
      _
    %105 = vsyncpa [#allocation5], 1

// kernel: optaeg_v1.3
$region0: #{optaeg_v1.3}
  #allocation0 [shape = 'u32[]', space=smem, size = 0x4, offset = 0x4, fixed_abs, tag = 'smem constant byte address 0x4 - core index']
  #allocation1 [shape = 'u32[144,128]{1,0:T(1,128)}', space=vmem, size = 0x12000, scoped, tag = 'internal scratch']
  %s0 = inlined_call_operand.vmem [shape: f32[8,128], index: 0, kind: input, shape index: {}]
  %s1 = inlined_call_operand.vmem [shape: f32[16,128], index: 1, kind: input, shape index: {}]
  %s2 = inlined_call_operand.vmem [shape: f32[16,128], index: 2, kind: output, shape index: {}]
  %s3 = sld [smem:[#allocation0]]
  $region18: #{optaeg_v1.3} parent=0
    _
  %s5 = ssub.s32 1, %s3
  %s6 = scalar_select 0, %s5, %s3
  // Predicated region
  $region2: #{optaeg_v1.3} parent=0 // pred_check
    _
  $region3: #{optaeg_v1.3} parent=0 // pred_check_branch
    %8 = sbr.rel (0) target = $region5
  $region4: #{optaeg_v1.3} parent=0 // pred_region
    _
  $region5: #{optaeg_v1.3} parent=0 // pred_fallthru
    _
  // Predicated region
  $region6: #{optaeg_v1.3} parent=0 // pred_check
    _
  $region7: #{optaeg_v1.3} parent=0 // pred_check_branch
    %10 = sbr.rel (0) target = $region9
  $region8: #{optaeg_v1.3} parent=0 // pred_region
    _
  $region9: #{optaeg_v1.3} parent=0 // pred_fallthru
    _
  %v11 = vld [vmem:[%s0] sm:$0x1]
  %v12 = vld [vmem:[%s0 + $0x1] sm:$0x1]
  %v13 = vld [vmem:[%s0 + $0x2] sm:$0x1]
  %v14 = vld [vmem:[%s0 + $0x3] sm:$0x1]
  %v15 = vld [vmem:[%s0 + $0x4] sm:$0x1]
  %v16 = vld [vmem:[%s0 + $0x5] sm:$0x1]
  %v17 = vld [vmem:[%s0 + $0x6] sm:$0x1]
  %v18 = vld [vmem:[%s1] sm:$0xff]
  %v19 = vld [vmem:[%s1 + $0x8] sm:$0xff]
  %v20 = vlaneseq
  %v21 = vshrl.u32 %v20, 7
  %v22 = vsub.s32 0, %v21
  %v23 = vrot.slane %v11, %v22
  %v24 = vmul.f32 %v18, %v23
  %v25 = vmul.f32 %v19, %v23
  %v26 = vlaneseq
  %v27 = vshrl.u32 %v26, 7
  %v28 = vsub.s32 0, %v27
  %v29 = vrot.slane %v12, %v28
  %v30 = vsub.f32 %v24, %v29
  %v31 = vsub.f32 %v25, %v29
  %v32 = vlaneseq
  %v33 = vshrl.u32 %v32, 7
  %v34 = vsub.s32 0, %v33
  %v35 = vrot.slane %v13, %v34
  %v36 = vmul.f32 %v35, %v30
  %v37 = vmul.f32 %v35, %v31
  %v38 = vlaneseq
  %v39 = vshrl.u32 %v38, 7
  %v40 = vsub.s32 0, %v39
  %v41 = vrot.slane %v14, %v40
  %v42 = vadd.f32 %v36, %v41
  %v43 = vadd.f32 %v37, %v41
  %v44 = vtanh.pop %v42
  %v45 = vtanh.pop %v43
  %v46 = vtanh.pop %v30
  %v47 = vtanh.pop %v31
  %v48 = vmul.f32 %v46, 2.7182817
  %v49 = vmul.f32 %v47, 2.7182817
  %v50 = vmul.f32 %v48, 1.442695
  %v51 = vpow.pop %v50
  %v52 = vmul.f32 %v49, 1.442695
  %v53 = vpow.pop %v52
  %v54 = vsub.f32 0.0, %v48
  %v55 = vsub.f32 0.0, %v49
  %v56 = vmul.f32 %v54, 1.442695
  %v57 = vpow.pop %v56
  %v58 = vmul.f32 %v55, 1.442695
  %v59 = vpow.pop %v58
  %v60 = vlaneseq
  %v61 = vshrl.u32 %v60, 7
  %v62 = vsub.s32 0, %v61
  %v63 = vrot.slane %v15, %v62
  %v64 = vmul.f32 %v63, %v51
  %v65 = vmul.f32 %v63, %v53
  %v66 = vlaneseq
  %v67 = vshrl.u32 %v66, 7
  %v68 = vsub.s32 0, %v67
  %v69 = vrot.slane %v16, %v68
  %v70 = vmul.f32 %v69, %v57
  %v71 = vmul.f32 %v69, %v59
  %v72 = vadd.f32 %v64, %v70
  %v73 = vadd.f32 %v65, %v71
  %v74 = vmul.f32 %v30, %v72
  %v75 = vmul.f32 %v31, %v73
  %v76 = vlaneseq
  %v77 = vshrl.u32 %v76, 7
  %v78 = vsub.s32 0, %v77
  %v79 = vrot.slane %v17, %v78
  %v80 = vmul.f32 %v79, %v44
  %v81 = vmul.f32 %v79, %v45
  %v82 = vadd.f32 %v74, %v80
  %v83 = vadd.f32 %v75, %v81
  %84 = vst [vmem:[%s2] sm:$0xff] %v82
  %85 = vst [vmem:[%s2 + $0x8] sm:$0xff] %v83
  // Predicated region
  $region10: #{optaeg_v1.3} parent=0 // pred_check
    _
  $region11: #{optaeg_v1.3} parent=0 // pred_check_branch
    %87 = sbr.rel (0) target = $region13
  $region12: #{optaeg_v1.3} parent=0 // pred_region
    _
  $region13: #{optaeg_v1.3} parent=0 // pred_fallthru
    _
  // Predicated region
  $region14: #{optaeg_v1.3} parent=0 // pred_check
    _
  $region15: #{optaeg_v1.3} parent=0 // pred_check_branch
    %89 = sbr.rel (0) target = $region17
  $region16: #{optaeg_v1.3} parent=0 // pred_region
    _
  $region17: #{optaeg_v1.3} parent=0 // pred_fallthru
    _

</llo_original>
